<compile_context>
chip_gen: v7x
topology: tpu7x:2x2x1
jax: 0.10.0
libtpu: 0.0.40
codegen_flags: <defaults>
</compile_context>

<pallas_src>
import functools
import math

import jax
import jax.numpy as jnp
from jax.experimental import pallas as pl
from jax.experimental.pallas import tpu as pltpu

HIDDEN = 128                       # fixed by the module: Linear(nm,128)->128->nm
ROWS_MAX = 4096                    # cap on fused batch*time rows per grid step
IO_SLAB_VMEM_BUDGET = 12 << 20     # byte budget for the double-buffered x/out slabs


def _clean_net_kernel(x_ref, w1_ref, b1_ref, w2_ref, b2_ref, w3_ref, b3_ref,
                      mask_ref, rho_ref, out_ref, *, b_tile, nt, nm):
    """One grid step: b_tile batch elements, all nt timesteps, native nm lanes."""
    xb = x_ref[...]                                     # (b_tile, nt, nm), native dtype
    x32 = xb.astype(jnp.float32)

    # Fuse batch*time into the matmul M dimension (free view when nt % 8 == 0).
    rows = b_tile * nt
    x2 = xb.reshape(rows, nm).astype(jnp.bfloat16)

    # 3-layer MLP per timestep: Linear -> ReLU -> Linear -> ReLU -> Linear.
    # bf16 operands on the MXU, f32 accumulation, f32 bias adds.
    h = jnp.dot(x2, w1_ref[...], preferred_element_type=jnp.float32) + b1_ref[...]
    h = jnp.maximum(h, 0.0)
    h = jnp.dot(h.astype(jnp.bfloat16), w2_ref[...],
                preferred_element_type=jnp.float32) + b2_ref[...]
    h = jnp.maximum(h, 0.0)
    y = jnp.dot(h.astype(jnp.bfloat16), w3_ref[...],
                preferred_element_type=jnp.float32) + b3_ref[...]

    out3 = x32 + y.reshape(b_tile, nt, nm)              # residual connection (f32)

    # Subtract the per-batch temporal mean of mode columns 0..1 only.
    # mask_ref is (1, nm) with 1.0 for cols < 2, else 0.0 (precomputed; nm >= 2).
    col_mean = jnp.mean(out3, axis=1, keepdims=True)     # (b_tile, 1, nm)
    out3 = out3 - col_mean * mask_ref[...].reshape(1, 1, nm)

    out_ref[...] = (out3 * rho_ref[0, 0]).astype(out_ref.dtype)


def _choose_b_tile(nb, nt, nm, x_bytes):
    """Largest divisor of nb fitting the VMEM row budget, with >=2 grid steps."""
    # bytes/row: double-buffered x+out slabs + live f32 intermediates.
    per_row = nm * (x_bytes + 4) * 2 + HIDDEN * 4 * 2 + nm * 4
    rows_budget = max(nt, min(ROWS_MAX, IO_SLAB_VMEM_BUDGET // max(per_row, 1)))
    max_bt = max(1, min(nb, rows_budget // max(nt, 1)))
    if nb >= 2:
        # Keep >= 2 grid steps so ("parallel",) shards across v7x's two
        # TensorCores and DMA/compute pipelining has something to overlap.
        max_bt = min(max_bt, nb // 2)
    for bt in range(max(max_bt, 1), 0, -1):
        if nb % bt == 0:
            return bt
    return 1


def clean_network_forward(x, params, index, rho):
    """JAX/Pallas equivalent of CleanNetwork.forward(x, index, rho=rho).

    x may be float32 or bfloat16; it is streamed at native width/dtype
    (no padding, no wrapper-side copies).  Output is float32.
    """
    nb, nt, nm = x.shape
    w1, b1, w2, b2, w3, b3 = params[index]
    hidden = w1.shape[1]
    x_bytes = jnp.dtype(x.dtype).itemsize

    b_tile = _choose_b_tile(nb, nt, nm, x_bytes)
    grid = (nb // b_tile,)
    rows = b_tile * nt

    # Matmul operands in bf16 (halves weight DMA bytes); biases stay f32.
    w1b = w1.astype(jnp.bfloat16)
    w2b = w2.astype(jnp.bfloat16)
    w3b = w3.astype(jnp.bfloat16)
    b1f = b1.astype(jnp.float32).reshape(1, hidden)
    b2f = b2.astype(jnp.float32).reshape(1, hidden)
    b3f = b3.astype(jnp.float32).reshape(1, nm)
    mask = (jnp.arange(nm) < 2).astype(jnp.float32)[None, :]     # (1, nm)
    rho_arr = jnp.asarray(rho, jnp.float32).reshape(1, 1)

    kernel = functools.partial(_clean_net_kernel, b_tile=b_tile, nt=nt, nm=nm)

    def const2d(a):
        # Whole-array block with a constant index_map: fetched once by the pipeline.
        return pl.BlockSpec(a.shape, lambda g: (0, 0))

    flops = 2 * nb * nt * (nm * hidden + hidden * hidden + hidden * nm)
    bytes_accessed = (x.size * x_bytes + x.size * 4                 # x in, out f32
                      + (w1b.size + w2b.size + w3b.size) * 2        # bf16 weights
                      + (b1f.size + b2f.size + b3f.size + mask.size) * 4)

    # Explicit VMEM limit: v7x only has 64 MiB physical, 32 MiB default scoped.
    need = (rows * nm * (x_bytes + 4) * 2                           # x + out blocks, 2x buffered
            + (w1b.size + w2b.size + w3b.size) * 2 * 2
            + (b1f.size + b2f.size + b3f.size + mask.size) * 4 * 2
            + rows * (hidden * 4 * 3 + nm * 4 * 2))                 # live f32 intermediates
    vmem_limit = int(min(48 << 20, max(32 << 20, 2 * need)))

    out = pl.pallas_call(
        kernel,
        out_shape=jax.ShapeDtypeStruct((nb, nt, nm), jnp.float32),
        grid=grid,
        in_specs=[
            pl.BlockSpec((b_tile, nt, nm), lambda g: (g, 0, 0)),    # x slab
            const2d(w1b), const2d(b1f),
            const2d(w2b), const2d(b2f),
            const2d(w3b), const2d(b3f),
            const2d(mask),
            pl.BlockSpec(memory_space=pltpu.MemorySpace.SMEM),      # rho scalar
        ],
        out_specs=pl.BlockSpec((b_tile, nt, nm), lambda g: (g, 0, 0)),
        compiler_params=pltpu.CompilerParams(
            dimension_semantics=("parallel",),
            vmem_limit_bytes=vmem_limit),
        cost_estimate=pl.CostEstimate(flops=flops, transcendentals=0,
                                      bytes_accessed=bytes_accessed),
    )(x, w1b, b1f, w2b, b2f, w3b, b3f, mask, rho_arr)

    return out


def init_params(key, n_modes, gradient_steps):
    """Deterministic kaiming-uniform-like init (bias=0), one net per step.

    Weights are stored as (in, out), i.e. already transposed relative to
    nn.Linear.weight, so the forward pass is x @ w + b.
    """
    def kaiming_uniform(k, fan_in, shape):
        gain = math.sqrt(2.0)  # leaky_relu gain (a=0), as in kaiming_uniform_
        bound = gain * math.sqrt(3.0 / fan_in)
        return jax.random.uniform(k, shape, jnp.float32, -bound, bound)

    params = []
    for _ in range(gradient_steps):
        key, k1, k2, k3 = jax.random.split(key, 4)
        w1 = kaiming_uniform(k1, n_modes, (n_modes, HIDDEN))
        b1 = jnp.zeros((1, HIDDEN), jnp.float32)
        w2 = kaiming_uniform(k2, HIDDEN, (HIDDEN, HIDDEN))
        b2 = jnp.zeros((1, HIDDEN), jnp.float32)
        w3 = kaiming_uniform(k3, HIDDEN, (HIDDEN, n_modes))
        b3 = jnp.zeros((1, n_modes), jnp.float32)
        params.append((w1, b1, w2, b2, w3, b3))
    return params


def reference_forward(x, params, index, rho, *, matmul_dtype=jnp.float32):
    """Pure-JAX reference. matmul_dtype=bfloat16 mirrors the kernel's MXU numerics."""
    nb, nt, nm = x.shape
    w1, b1, w2, b2, w3, b3 = params[index]

    def mm(a, w):
        return jnp.dot(a.astype(matmul_dtype), w.astype(matmul_dtype),
                       preferred_element_type=jnp.float32)

    x = x.astype(jnp.float32)
    h = jnp.maximum(mm(x, w1) + b1, 0.0)
    h = jnp.maximum(mm(h, w2) + b2, 0.0)
    out = x + (mm(h, w3) + b3)
    mean_tt = jnp.mean(out[:, :, 0:2], axis=1, keepdims=True)          # (nb, 1, 2)
    mean_full = jnp.pad(jnp.broadcast_to(mean_tt, (nb, nt, 2)),
                        ((0, 0), (0, 0), (0, nm - 2)))
    return (out - mean_full) * rho


if __name__ == "__main__":
    key = jax.random.PRNGKey(0)
    nb, nt, nm = 4, 16, 32          # batch, time, n_modes
    gradient_steps = 2

    kx, kp = jax.random.split(key)
    x = jax.random.normal(kx, (nb, nt, nm), jnp.float32)
    params = init_params(kp, nm, gradient_steps)
    rho = 1.5

    # f32 activation stream (module semantics).
    out = clean_network_forward(x, params, index=0, rho=rho)
    out = jax.block_until_ready(out)
    assert out.shape == (nb, nt, nm)

    # Tight check against a reference with the same bf16-operand / f32-acc numerics.
    ref_bf16 = reference_forward(x, params, 0, rho, matmul_dtype=jnp.bfloat16)
    assert bool(jnp.allclose(out, ref_bf16, atol=1e-3, rtol=1e-3)), \
        "mismatch vs bf16-matched reference"

    # Loose check against the full-f32 module semantics (covers bf16 operand error).
    ref_f32 = reference_forward(x, params, 0, rho)
    assert bool(jnp.allclose(out, ref_f32, atol=5e-2, rtol=5e-2)), \
        "mismatch vs f32 reference"

    # bf16 activation-stream path: halves the dominant x read for callers that
    # already keep activations in bf16; residual/mean still accumulate in f32.
    x_bf16 = x.astype(jnp.bfloat16)
    out_bf = clean_network_forward(x_bf16, params, index=1, rho=rho)
    out_bf = jax.block_until_ready(out_bf)
    ref_bf = reference_forward(x_bf16, params, 1, rho, matmul_dtype=jnp.bfloat16)
    assert bool(jnp.allclose(out_bf, ref_bf, atol=2e-3, rtol=2e-3)), \
        "mismatch on bf16 activation-stream path"

    print("KERNEL_OK")
</pallas_src>

<mosaic_0001>
module attributes {stable_mosaic.version = 11 : i64} {
  func.func @_clean_net_kernel(%arg0: i32, %arg1: memref<2x16x32xf32, #tpu.memory_space<vmem>>, %arg2: memref<32x128xbf16, #tpu.memory_space<vmem>>, %arg3: memref<1x128xf32, #tpu.memory_space<vmem>>, %arg4: memref<128x128xbf16, #tpu.memory_space<vmem>>, %arg5: memref<1x128xf32, #tpu.memory_space<vmem>>, %arg6: memref<128x32xbf16, #tpu.memory_space<vmem>>, %arg7: memref<1x32xf32, #tpu.memory_space<vmem>>, %arg8: memref<1x32xf32, #tpu.memory_space<vmem>>, %arg9: memref<1x1xf32, #tpu.memory_space<smem>>, %arg10: memref<2x16x32xf32, #tpu.memory_space<vmem>>) attributes {dimension_semantics = [#tpu.dimension_semantics<parallel>], iteration_bounds = array<i64: 2>, scalar_prefetch = 0 : i64, scratch_operands = 0 : i64, tpu.core_type = #tpu.core_type<tc>, window_params = [{transform_indices = @transform_0, window_bounds = array<i64: 2, 16, 32>}, {pipeline_mode = #tpu.pipeline_mode<synchronous>, transform_indices = @transform_1, window_bounds = array<i64: 32, 128>}, {pipeline_mode = #tpu.pipeline_mode<synchronous>, transform_indices = @transform_2, window_bounds = array<i64: 1, 128>}, {pipeline_mode = #tpu.pipeline_mode<synchronous>, transform_indices = @transform_3, window_bounds = array<i64: 128, 128>}, {pipeline_mode = #tpu.pipeline_mode<synchronous>, transform_indices = @transform_4, window_bounds = array<i64: 1, 128>}, {pipeline_mode = #tpu.pipeline_mode<synchronous>, transform_indices = @transform_5, window_bounds = array<i64: 128, 32>}, {pipeline_mode = #tpu.pipeline_mode<synchronous>, transform_indices = @transform_6, window_bounds = array<i64: 1, 32>}, {pipeline_mode = #tpu.pipeline_mode<synchronous>, transform_indices = @transform_7, window_bounds = array<i64: 1, 32>}, {transform_indices = @transform_8, window_bounds = array<i64: 1, 1>}, {transform_indices = @transform_9, window_bounds = array<i64: 2, 16, 32>}]} {
    %c0 = arith.constant 0 : index
    %c0_0 = arith.constant 0 : index
    %c0_1 = arith.constant 0 : index
    %0 = vector.load %arg1[%c0, %c0_0, %c0_1] : memref<2x16x32xf32, #tpu.memory_space<vmem>>, vector<2x16x32xf32>
    %1 = vector.shape_cast %0 : vector<2x16x32xf32> to vector<32x32xf32>
    %2 = arith.truncf %1 : vector<32x32xf32> to vector<32x32xbf16>
    %c0_2 = arith.constant 0 : index
    %c0_3 = arith.constant 0 : index
    %3 = vector.load %arg2[%c0_2, %c0_3] : memref<32x128xbf16, #tpu.memory_space<vmem>>, vector<32x128xbf16>
    %cst = arith.constant dense<0.000000e+00> : vector<32x128xf32>
    %4 = tpu.matmul %2, %3, %cst {dimension_numbers = #tpu.dot_dimension_numbers<[1], [0], [0], [1], [0, 0, 1, 1], [], []>} : vector<32x32xbf16>, vector<32x128xbf16>, vector<32x128xf32> -> vector<32x128xf32>
    %c0_4 = arith.constant 0 : index
    %c0_5 = arith.constant 0 : index
    %5 = vector.load %arg3[%c0_4, %c0_5] : memref<1x128xf32, #tpu.memory_space<vmem>>, vector<1x128xf32>
    %6 = vector.broadcast %5 : vector<1x128xf32> to vector<32x128xf32>
    %7 = arith.addf %4, %6 : vector<32x128xf32>
    %cst_6 = arith.constant 0.000000e+00 : f32
    %8 = vector.broadcast %cst_6 : f32 to vector<32x128xf32>
    %9 = arith.maximumf %7, %8 : vector<32x128xf32>
    %10 = arith.truncf %9 : vector<32x128xf32> to vector<32x128xbf16>
    %c0_7 = arith.constant 0 : index
    %c0_8 = arith.constant 0 : index
    %11 = vector.load %arg4[%c0_7, %c0_8] : memref<128x128xbf16, #tpu.memory_space<vmem>>, vector<128x128xbf16>
    %cst_9 = arith.constant dense<0.000000e+00> : vector<32x128xf32>
    %12 = tpu.matmul %10, %11, %cst_9 {dimension_numbers = #tpu.dot_dimension_numbers<[1], [0], [0], [1], [0, 0, 1, 1], [], []>} : vector<32x128xbf16>, vector<128x128xbf16>, vector<32x128xf32> -> vector<32x128xf32>
    %c0_10 = arith.constant 0 : index
    %c0_11 = arith.constant 0 : index
    %13 = vector.load %arg5[%c0_10, %c0_11] : memref<1x128xf32, #tpu.memory_space<vmem>>, vector<1x128xf32>
    %14 = vector.broadcast %13 : vector<1x128xf32> to vector<32x128xf32>
    %15 = arith.addf %12, %14 : vector<32x128xf32>
    %cst_12 = arith.constant 0.000000e+00 : f32
    %16 = vector.broadcast %cst_12 : f32 to vector<32x128xf32>
    %17 = arith.maximumf %15, %16 : vector<32x128xf32>
    %18 = arith.truncf %17 : vector<32x128xf32> to vector<32x128xbf16>
    %c0_13 = arith.constant 0 : index
    %c0_14 = arith.constant 0 : index
    %19 = vector.load %arg6[%c0_13, %c0_14] : memref<128x32xbf16, #tpu.memory_space<vmem>>, vector<128x32xbf16>
    %cst_15 = arith.constant dense<0.000000e+00> : vector<32x32xf32>
    %20 = tpu.matmul %18, %19, %cst_15 {dimension_numbers = #tpu.dot_dimension_numbers<[1], [0], [0], [1], [0, 0, 1, 1], [], []>} : vector<32x128xbf16>, vector<128x32xbf16>, vector<32x32xf32> -> vector<32x32xf32>
    %c0_16 = arith.constant 0 : index
    %c0_17 = arith.constant 0 : index
    %21 = vector.load %arg7[%c0_16, %c0_17] : memref<1x32xf32, #tpu.memory_space<vmem>>, vector<1x32xf32>
    %22 = vector.broadcast %21 : vector<1x32xf32> to vector<32x32xf32>
    %23 = arith.addf %20, %22 : vector<32x32xf32>
    %24 = vector.shape_cast %23 : vector<32x32xf32> to vector<2x16x32xf32>
    %25 = arith.addf %0, %24 : vector<2x16x32xf32>
    %cst_18 = arith.constant dense<0.000000e+00> : vector<2x32xf32>
    %26 = vector.multi_reduction <add>, %25, %cst_18 [1] : vector<2x16x32xf32> to vector<2x32xf32>
    %27 = vector.shape_cast %26 : vector<2x32xf32> to vector<2x1x32xf32>
    %cst_19 = arith.constant 1.600000e+01 : f32
    %28 = vector.broadcast %cst_19 : f32 to vector<2x1x32xf32>
    %29 = arith.divf %27, %28 : vector<2x1x32xf32>
    %c0_20 = arith.constant 0 : index
    %c0_21 = arith.constant 0 : index
    %30 = vector.load %arg8[%c0_20, %c0_21] : memref<1x32xf32, #tpu.memory_space<vmem>>, vector<1x32xf32>
    %31 = vector.shape_cast %30 : vector<1x32xf32> to vector<1x1x32xf32>
    %32 = vector.broadcast %31 : vector<1x1x32xf32> to vector<2x1x32xf32>
    %33 = arith.mulf %29, %32 : vector<2x1x32xf32>
    %34 = vector.broadcast %33 : vector<2x1x32xf32> to vector<2x16x32xf32>
    %35 = arith.subf %25, %34 : vector<2x16x32xf32>
    %c0_22 = arith.constant 0 : index
    %c0_23 = arith.constant 0 : index
    %36 = memref.load %arg9[%c0_22, %c0_23] : memref<1x1xf32, #tpu.memory_space<smem>>
    %37 = vector.broadcast %36 : f32 to vector<2x16x32xf32>
    %38 = arith.mulf %35, %37 : vector<2x16x32xf32>
    %c0_24 = arith.constant 0 : index
    %c0_25 = arith.constant 0 : index
    %c0_26 = arith.constant 0 : index
    %39 = vector.load %arg10[%c0_24, %c0_25, %c0_26] : memref<2x16x32xf32, #tpu.memory_space<vmem>>, vector<2x16x32xf32>
    tpu.vector_store %arg10[%c0_24, %c0_25, %c0_26], %38 {strides = array<i32>} : memref<2x16x32xf32, #tpu.memory_space<vmem>>, vector<2x16x32xf32>,
    return
  }
  func.func @transform_0(%arg0: i32) -> (i32, i32, i32) {
    %c0_i32 = arith.constant 0 : i32
    %c0_i32_0 = arith.constant 0 : i32
    %c0_i32_1 = arith.constant 0 : i32
    return %arg0, %c0_i32, %c0_i32_0 : i32, i32, i32
  }
  func.func @transform_1(%arg0: i32) -> (i32, i32) {
    %c0_i32 = arith.constant 0 : i32
    %c0_i32_0 = arith.constant 0 : i32
    %c0_i32_1 = arith.constant 0 : i32
    return %c0_i32, %c0_i32_0 : i32, i32
  }
  func.func @transform_2(%arg0: i32) -> (i32, i32) {
    %c0_i32 = arith.constant 0 : i32
    %c0_i32_0 = arith.constant 0 : i32
    %c0_i32_1 = arith.constant 0 : i32
    return %c0_i32, %c0_i32_0 : i32, i32
  }
  func.func @transform_3(%arg0: i32) -> (i32, i32) {
    %c0_i32 = arith.constant 0 : i32
    %c0_i32_0 = arith.constant 0 : i32
    %c0_i32_1 = arith.constant 0 : i32
    return %c0_i32, %c0_i32_0 : i32, i32
  }
  func.func @transform_4(%arg0: i32) -> (i32, i32) {
    %c0_i32 = arith.constant 0 : i32
    %c0_i32_0 = arith.constant 0 : i32
    %c0_i32_1 = arith.constant 0 : i32
    return %c0_i32, %c0_i32_0 : i32, i32
  }
  func.func @transform_5(%arg0: i32) -> (i32, i32) {
    %c0_i32 = arith.constant 0 : i32
    %c0_i32_0 = arith.constant 0 : i32
    %c0_i32_1 = arith.constant 0 : i32
    return %c0_i32, %c0_i32_0 : i32, i32
  }
  func.func @transform_6(%arg0: i32) -> (i32, i32) {
    %c0_i32 = arith.constant 0 : i32
    %c0_i32_0 = arith.constant 0 : i32
    %c0_i32_1 = arith.constant 0 : i32
    return %c0_i32, %c0_i32_0 : i32, i32
  }
  func.func @transform_7(%arg0: i32) -> (i32, i32) {
    %c0_i32 = arith.constant 0 : i32
    %c0_i32_0 = arith.constant 0 : i32
    %c0_i32_1 = arith.constant 0 : i32
    return %c0_i32, %c0_i32_0 : i32, i32
  }
  func.func @transform_8(%arg0: i32) -> (i32, i32) {
    %c0_i32 = arith.constant 0 : i32
    %c0_i32_0 = arith.constant 0 : i32
    %c0_i32_1 = arith.constant 0 : i32
    return %c0_i32, %c0_i32_0 : i32, i32
  }
  func.func @transform_9(%arg0: i32) -> (i32, i32, i32) {
    %c0_i32 = arith.constant 0 : i32
    %c0_i32_0 = arith.constant 0 : i32
    %c0_i32_1 = arith.constant 0 : i32
    return %arg0, %c0_i32, %c0_i32_0 : i32, i32, i32
  }
}

</mosaic_0001>

<llo_original>
// kernel: tpu_custom_call.1
$region0: #{tpu_custom_call.1}
  #allocation0 [shape = 'u32[]', space=smem, size = 0x4, offset = 0x4, fixed_abs, tag = 'smem constant byte address 0x4 - core index']
  #allocation1 [shape = 'u32[144,128]{1,0:T(1,128)}', space=vmem, size = 0x12000, scoped, tag = 'internal scratch']
  #allocation2 [shape = 'f32[1,1]{1,0:T(1,128)S(6)}', space=smem, size = 0x200, scoped, tag = 'scoped memory for tpu_custom_call.1']
  %s0 = inlined_call_operand.vmem [shape: f32[4,16,32], index: 0, kind: input, shape index: {}]
  %s1 = inlined_call_operand.vmem [shape: bf16[32,128], index: 1, kind: input, shape index: {}]
  %s2 = inlined_call_operand.vmem [shape: f32[1,128], index: 2, kind: input, shape index: {}]
  %s3 = inlined_call_operand.hbm [shape: bf16[128,128], index: 3, kind: input, shape index: {}]
  %s4 = inlined_call_operand.vmem [shape: f32[1,128], index: 4, kind: input, shape index: {}]
  %s5 = inlined_call_operand.vmem [shape: bf16[128,32], index: 5, kind: input, shape index: {}]
  %s6 = inlined_call_operand.vmem [shape: f32[1,32], index: 6, kind: input, shape index: {}]
  %s7 = inlined_call_operand.vmem [shape: f32[1,32], index: 7, kind: input, shape index: {}]
  %s8 = inlined_call_operand.<no memory space> [shape: f32[1,1], index: 8, kind: input, shape index: {}]
  %s9 = inlined_call_operand.hbm [shape: f32[4,16,32], index: 9, kind: output, shape index: {}]
  %s10 = sld [smem:[#allocation0]]
  $region73: #{tpu_custom_call.1} parent=0
    _
  %s12 = ssub.s32 1, %s10
  %s13 = scalar_select 0, %s12, %s10
  %14 = sst [smem:[#allocation2]] %s8
  $region1: #{tpu_custom_call.1} parent=0
    #allocation3 [shape = 'u8[32768]{0}', space=vmem, size = 0x8000, scoped, tag = 'input window, operand 3, single buffered']
    #allocation4 [shape = 's32[2]{0}', space=sflag, size = 0x8, scoped, tag = 'scoped memory for tpu_custom_call.1']
    #allocation5 [shape = 's32[2]{0}', space=sflag, size = 0x8, scoped, tag = 'scoped memory for tpu_custom_call.1']
    #allocation6 [shape = 'u8[32768]{0}', space=vmem, size = 0x8000, scoped, tag = 'output window, operand 0']
    %15 = vsyncpa [#allocation4], 0
    %16 = vsyncpa [#allocation5], 0
    %s17 = scalar_lea.sflag [#allocation5], 1
    %18 = vsyncpa %s17, 0
    loop: start=0, step=1, limit=4
    $region2: #{tpu_custom_call.1} parent=1 // loop_pre_header
      _
    $region3: #{tpu_custom_call.1} parent=1 // loop_header
      %s20 = sphi 0, %s24
      %p21 = scmp.ge.s32.totalorder %s20, 4
      %s30 = sphi 0, %s32
      %s33 = sphi 0, %s30
      %s34 = sphi 0, %s33
      %s50 = sphi 0, %s34
      %s54 = sphi 0, %s54
      %s56 = sphi 0, %s54
      %s57 = sphi 0, %s56
      %s71 = sphi 0, %s57
      %s75 = sphi 0, %s75
      %s77 = sphi 0, %s75
      %s78 = sphi 0, %s77
      %s92 = sphi 0, %s78
      %s96 = sphi 0, %s96
      %s98 = sphi 0, %s96
      %s99 = sphi 0, %s98
      %s113 = sphi 0, %s99
      %s117 = sphi 0, %s117
      %s119 = sphi 0, %s117
      %s120 = sphi 0, %s119
      %s134 = sphi 0, %s120
      %s138 = sphi 0, %s138
      %s140 = sphi 0, %s138
      %s141 = sphi 0, %s140
      %s155 = sphi 0, %s141
      %s159 = sphi 0, %s159
      %s161 = sphi 0, %s159
      %s162 = sphi 0, %s161
      %s176 = sphi 0, %s162
      %s180 = sphi 0, %s180
      %s182 = sphi 0, %s180
      %s183 = sphi 0, %s182
      %s197 = sphi 0, %s183
      %s201 = sphi 0, %s201
      %s203 = sphi 0, %s201
      %s204 = sphi 0, %s203
      %s218 = sphi 0, %s204
      %s224 = sphi 0, %s226
      %s227 = sphi 0, %s224
      %s228 = sphi 0, %s227
      %s244 = sphi 0, %s228
    $region4: #{tpu_custom_call.1} parent=1 // loop_header_branch
      %23 = sbr.rel (%p21) target = $region8
    $region5: #{tpu_custom_call.1} parent=1 // loop_body
      %s25 = ssub.s32 %s20, 1
      %s26 = ssub.s32 %s20, 2
      %s27 = sadd.s32 %s20, 1
      %s28 = ssub.s32 %s20, %s27
      %p29 = scmp.eq.s32.totalorder %s28, 0
      %s31 = sadd.s32 %s30, 1
      %s32 = scalar_select %p29, %s30, %s31
      %p35 = pneg %p29
      %p36 = scmp.eq.s32.totalorder %s20, 1
      %p37 = por %p35, %p36
      %p38 = scmp.ne.s32.totalorder %s30, %s33
      %p39 = scmp.eq.s32.totalorder %s20, 0
      %p40 = por %p38, %p39
      %p41 = scmp.ne.s32.totalorder %s30, %s33
      %p42 = scmp.eq.s32.totalorder %s25, 1
      %p43 = por %p41, %p42
      %p44 = scmp.ne.s32.totalorder %s33, %s34
      %p45 = scmp.eq.s32.totalorder %s25, 0
      %p46 = por %p44, %p45
      %p47 = scmp.ne.s32.totalorder %s33, %s34
      %p48 = scmp.eq.s32.totalorder %s26, 1
      %p49 = por %p47, %p48
      %p51 = scmp.ne.s32.totalorder %s34, %s50
      %p52 = scmp.eq.s32.totalorder %s26, 0
      %p53 = por %p51, %p52
      %s55 = sadd.s32 %s54, 1
      %p58 = scmp.eq.s32.totalorder %s20, 1
      %p59 = scmp.ne.s32.totalorder %s54, %s56
      %p60 = scmp.eq.s32.totalorder %s20, 0
      %p61 = por %p59, %p60
      %p62 = scmp.ne.s32.totalorder %s54, %s56
      %p63 = scmp.eq.s32.totalorder %s25, 1
      %p64 = por %p62, %p63
      %p65 = scmp.ne.s32.totalorder %s56, %s57
      %p66 = scmp.eq.s32.totalorder %s25, 0
      %p67 = por %p65, %p66
      %p68 = scmp.ne.s32.totalorder %s56, %s57
      %p69 = scmp.eq.s32.totalorder %s26, 1
      %p70 = por %p68, %p69
      %p72 = scmp.ne.s32.totalorder %s57, %s71
      %p73 = scmp.eq.s32.totalorder %s26, 0
      %p74 = por %p72, %p73
      %s76 = sadd.s32 %s75, 1
      %p79 = scmp.eq.s32.totalorder %s20, 1
      %p80 = scmp.ne.s32.totalorder %s75, %s77
      %p81 = scmp.eq.s32.totalorder %s20, 0
      %p82 = por %p80, %p81
      %p83 = scmp.ne.s32.totalorder %s75, %s77
      %p84 = scmp.eq.s32.totalorder %s25, 1
      %p85 = por %p83, %p84
      %p86 = scmp.ne.s32.totalorder %s77, %s78
      %p87 = scmp.eq.s32.totalorder %s25, 0
      %p88 = por %p86, %p87
      %p89 = scmp.ne.s32.totalorder %s77, %s78
      %p90 = scmp.eq.s32.totalorder %s26, 1
      %p91 = por %p89, %p90
      %p93 = scmp.ne.s32.totalorder %s78, %s92
      %p94 = scmp.eq.s32.totalorder %s26, 0
      %p95 = por %p93, %p94
      %s97 = sadd.s32 %s96, 1
      %p100 = scmp.eq.s32.totalorder %s20, 1
      %p101 = scmp.ne.s32.totalorder %s96, %s98
      %p102 = scmp.eq.s32.totalorder %s20, 0
      %p103 = por %p101, %p102
      %p104 = scmp.ne.s32.totalorder %s96, %s98
      %p105 = scmp.eq.s32.totalorder %s25, 1
      %p106 = por %p104, %p105
      %p107 = scmp.ne.s32.totalorder %s98, %s99
      %p108 = scmp.eq.s32.totalorder %s25, 0
      %p109 = por %p107, %p108
      %p110 = scmp.ne.s32.totalorder %s98, %s99
      %p111 = scmp.eq.s32.totalorder %s26, 1
      %p112 = por %p110, %p111
      %p114 = scmp.ne.s32.totalorder %s99, %s113
      %p115 = scmp.eq.s32.totalorder %s26, 0
      %p116 = por %p114, %p115
      %s118 = sadd.s32 %s117, 1
      %p121 = scmp.eq.s32.totalorder %s20, 1
      %p122 = scmp.ne.s32.totalorder %s117, %s119
      %p123 = scmp.eq.s32.totalorder %s20, 0
      %p124 = por %p122, %p123
      %p125 = scmp.ne.s32.totalorder %s117, %s119
      %p126 = scmp.eq.s32.totalorder %s25, 1
      %p127 = por %p125, %p126
      %p128 = scmp.ne.s32.totalorder %s119, %s120
      %p129 = scmp.eq.s32.totalorder %s25, 0
      %p130 = por %p128, %p129
      %p131 = scmp.ne.s32.totalorder %s119, %s120
      %p132 = scmp.eq.s32.totalorder %s26, 1
      %p133 = por %p131, %p132
      %p135 = scmp.ne.s32.totalorder %s120, %s134
      %p136 = scmp.eq.s32.totalorder %s26, 0
      %p137 = por %p135, %p136
      %s139 = sadd.s32 %s138, 1
      %p142 = scmp.eq.s32.totalorder %s20, 1
      %p143 = scmp.ne.s32.totalorder %s138, %s140
      %p144 = scmp.eq.s32.totalorder %s20, 0
      %p145 = por %p143, %p144
      %p146 = scmp.ne.s32.totalorder %s138, %s140
      %p147 = scmp.eq.s32.totalorder %s25, 1
      %p148 = por %p146, %p147
      %p149 = scmp.ne.s32.totalorder %s140, %s141
      %p150 = scmp.eq.s32.totalorder %s25, 0
      %p151 = por %p149, %p150
      %p152 = scmp.ne.s32.totalorder %s140, %s141
      %p153 = scmp.eq.s32.totalorder %s26, 1
      %p154 = por %p152, %p153
      %p156 = scmp.ne.s32.totalorder %s141, %s155
      %p157 = scmp.eq.s32.totalorder %s26, 0
      %p158 = por %p156, %p157
      %s160 = sadd.s32 %s159, 1
      %p163 = scmp.eq.s32.totalorder %s20, 1
      %p164 = scmp.ne.s32.totalorder %s159, %s161
      %p165 = scmp.eq.s32.totalorder %s20, 0
      %p166 = por %p164, %p165
      %p167 = scmp.ne.s32.totalorder %s159, %s161
      %p168 = scmp.eq.s32.totalorder %s25, 1
      %p169 = por %p167, %p168
      %p170 = scmp.ne.s32.totalorder %s161, %s162
      %p171 = scmp.eq.s32.totalorder %s25, 0
      %p172 = por %p170, %p171
      %p173 = scmp.ne.s32.totalorder %s161, %s162
      %p174 = scmp.eq.s32.totalorder %s26, 1
      %p175 = por %p173, %p174
      %p177 = scmp.ne.s32.totalorder %s162, %s176
      %p178 = scmp.eq.s32.totalorder %s26, 0
      %p179 = por %p177, %p178
      %s181 = sadd.s32 %s180, 1
      %p184 = scmp.eq.s32.totalorder %s20, 1
      %p185 = scmp.ne.s32.totalorder %s180, %s182
      %p186 = scmp.eq.s32.totalorder %s20, 0
      %p187 = por %p185, %p186
      %p188 = scmp.ne.s32.totalorder %s180, %s182
      %p189 = scmp.eq.s32.totalorder %s25, 1
      %p190 = por %p188, %p189
      %p191 = scmp.ne.s32.totalorder %s182, %s183
      %p192 = scmp.eq.s32.totalorder %s25, 0
      %p193 = por %p191, %p192
      %p194 = scmp.ne.s32.totalorder %s182, %s183
      %p195 = scmp.eq.s32.totalorder %s26, 1
      %p196 = por %p194, %p195
      %p198 = scmp.ne.s32.totalorder %s183, %s197
      %p199 = scmp.eq.s32.totalorder %s26, 0
      %p200 = por %p198, %p199
      %s202 = sadd.s32 %s201, 1
      %p205 = scmp.eq.s32.totalorder %s20, 1
      %p206 = scmp.ne.s32.totalorder %s201, %s203
      %p207 = scmp.eq.s32.totalorder %s20, 0
      %p208 = por %p206, %p207
      %p209 = scmp.ne.s32.totalorder %s201, %s203
      %p210 = scmp.eq.s32.totalorder %s25, 1
      %p211 = por %p209, %p210
      %p212 = scmp.ne.s32.totalorder %s203, %s204
      %p213 = scmp.eq.s32.totalorder %s25, 0
      %p214 = por %p212, %p213
      %p215 = scmp.ne.s32.totalorder %s203, %s204
      %p216 = scmp.eq.s32.totalorder %s26, 1
      %p217 = por %p215, %p216
      %p219 = scmp.ne.s32.totalorder %s204, %s218
      %p220 = scmp.eq.s32.totalorder %s26, 0
      %p221 = por %p219, %p220
      %s222 = ssub.s32 %s20, %s27
      %p223 = scmp.eq.s32.totalorder %s222, 0
      %s225 = sadd.s32 %s224, 1
      %s226 = scalar_select %p223, %s224, %s225
      %p229 = pneg %p223
      %p230 = scmp.eq.s32.totalorder %s20, 1
      %p231 = por %p229, %p230
      %p232 = scmp.ne.s32.totalorder %s224, %s227
      %p233 = scmp.eq.s32.totalorder %s20, 0
      %p234 = por %p232, %p233
      %p235 = scmp.ne.s32.totalorder %s224, %s227
      %p236 = scmp.eq.s32.totalorder %s25, 1
      %p237 = por %p235, %p236
      %p238 = scmp.ne.s32.totalorder %s227, %s228
      %p239 = scmp.eq.s32.totalorder %s25, 0
      %p240 = por %p238, %p239
      %p241 = scmp.ne.s32.totalorder %s227, %s228
      %p242 = scmp.eq.s32.totalorder %s26, 1
      %p243 = por %p241, %p242
      %p245 = scmp.ne.s32.totalorder %s228, %s244
      %p246 = scmp.eq.s32.totalorder %s26, 0
      %p247 = por %p245, %p246
      %p248 = scmp.le.s32.totalorder 1, %s20
      %p249 = scmp.lt.s32.totalorder %s20, 3
      %p250 = pnand %p248, %p249
      %p251 = pneg %p250
      // Predicated region
      $region9: #{tpu_custom_call.1} parent=5 // pred_check
        _
      $region10: #{tpu_custom_call.1} parent=5 // pred_check_branch
        %253 = sbr.rel (%p250) target = $region12
      $region11: #{tpu_custom_call.1} parent=5 // pred_region
        %s254 = ssub.s32 %s20, 1
        // Predicated region
        $region13: #{tpu_custom_call.1} parent=11 // pred_check
          %p255 = pneg %p67
        $region14: #{tpu_custom_call.1} parent=11 // pred_check_branch
          %257 = sbr.rel (%p255) target = $region16
        $region15: #{tpu_custom_call.1} parent=11 // pred_region
          _
        $region16: #{tpu_custom_call.1} parent=11 // pred_fallthru
          _
        // Predicated region
        $region17: #{tpu_custom_call.1} parent=11 // pred_check
          %p258 = pneg %p88
        $region18: #{tpu_custom_call.1} parent=11 // pred_check_branch
          %260 = sbr.rel (%p258) target = $region20
        $region19: #{tpu_custom_call.1} parent=11 // pred_region
          _
        $region20: #{tpu_custom_call.1} parent=11 // pred_fallthru
          _
        // Predicated region
        $region21: #{tpu_custom_call.1} parent=11 // pred_check
          %p261 = pneg %p109
        $region22: #{tpu_custom_call.1} parent=11 // pred_check_branch
          %263 = sbr.rel (%p261) target = $region24
        $region23: #{tpu_custom_call.1} parent=11 // pred_region
          %s265 = ssub.s32 1024, 1024
          %266 = vsyncadd [#allocation4], %s265
          %s267 = sshll.u32 [#allocation3], 4
          %s268 = int_to_ptr.vmem [resolvable:$true] %s267
          %273 = dma.hbm_to_vmem [thread:$0]  %s3, 1024, %s268, [#allocation4], 64, 64, 4
        $region24: #{tpu_custom_call.1} parent=11 // pred_fallthru
          _
        // Predicated region
        $region25: #{tpu_custom_call.1} parent=11 // pred_check
          %p274 = pneg %p130
        $region26: #{tpu_custom_call.1} parent=11 // pred_check_branch
          %276 = sbr.rel (%p274) target = $region28
        $region27: #{tpu_custom_call.1} parent=11 // pred_region
          _
        $region28: #{tpu_custom_call.1} parent=11 // pred_fallthru
          _
        // Predicated region
        $region29: #{tpu_custom_call.1} parent=11 // pred_check
          %p277 = pneg %p151
        $region30: #{tpu_custom_call.1} parent=11 // pred_check_branch
          %279 = sbr.rel (%p277) target = $region32
        $region31: #{tpu_custom_call.1} parent=11 // pred_region
          _
        $region32: #{tpu_custom_call.1} parent=11 // pred_fallthru
          _
        // Predicated region
        $region33: #{tpu_custom_call.1} parent=11 // pred_check
          %p280 = pneg %p172
        $region34: #{tpu_custom_call.1} parent=11 // pred_check_branch
          %282 = sbr.rel (%p280) target = $region36
        $region35: #{tpu_custom_call.1} parent=11 // pred_region
          _
        $region36: #{tpu_custom_call.1} parent=11 // pred_fallthru
          _
        // Predicated region
        $region37: #{tpu_custom_call.1} parent=11 // pred_check
          %p283 = pneg %p193
        $region38: #{tpu_custom_call.1} parent=11 // pred_check_branch
          %285 = sbr.rel (%p283) target = $region40
        $region39: #{tpu_custom_call.1} parent=11 // pred_region
          _
        $region40: #{tpu_custom_call.1} parent=11 // pred_fallthru
          _
        // Predicated region
        $region41: #{tpu_custom_call.1} parent=11 // pred_check
          %p286 = pneg %p214
        $region42: #{tpu_custom_call.1} parent=11 // pred_check_branch
          %288 = sbr.rel (%p286) target = $region44
        $region43: #{tpu_custom_call.1} parent=11 // pred_region
          _
        $region44: #{tpu_custom_call.1} parent=11 // pred_fallthru
          _
      $region12: #{tpu_custom_call.1} parent=5 // pred_fallthru
        _
      %p289 = scmp.lt.s32.totalorder %s20, 2
      // Predicated region
      $region45: #{tpu_custom_call.1} parent=5 // pred_check
        %p290 = pneg %p289
      $region46: #{tpu_custom_call.1} parent=5 // pred_check_branch
        %292 = sbr.rel (%p290) target = $region48
      $region47: #{tpu_custom_call.1} parent=5 // pred_region
        // Predicated region
        $region49: #{tpu_custom_call.1} parent=47 // pred_check
          %p293 = pneg %p40
        $region50: #{tpu_custom_call.1} parent=47 // pred_check_branch
          %295 = sbr.rel (%p293) target = $region52
        $region51: #{tpu_custom_call.1} parent=47 // pred_region
          %s296 = smul.u32 2, %s20
          %p297 = scmp.lt.s32.totalorder %s296, 3
          %s298 = scalar_select %p297, %s296, 3
          %s299 = smul.addr %s298, 2
          %s300 = smul.addr %s299, 8
          %s301 = scalar_lea.vmem %s0, %s300
          %s302 = smul.u32 2, %s20
        $region52: #{tpu_custom_call.1} parent=47 // pred_fallthru
          _
      $region48: #{tpu_custom_call.1} parent=5 // pred_fallthru
        _
      %p303 = scmp.le.s32.totalorder 1, %s20
      %p304 = scmp.lt.s32.totalorder %s20, 3
      %p305 = pnand %p303, %p304
      %p306 = pneg %p305
      // Predicated region
      $region53: #{tpu_custom_call.1} parent=5 // pred_check
        _
      $region54: #{tpu_custom_call.1} parent=5 // pred_check_branch
        %308 = sbr.rel (%p305) target = $region56
      $region55: #{tpu_custom_call.1} parent=5 // pred_region
        %s309 = ssub.s32 %s20, 1
        // Predicated region
        $region57: #{tpu_custom_call.1} parent=55 // pred_check
          %p310 = pneg %p109
        $region58: #{tpu_custom_call.1} parent=55 // pred_check_branch
          %312 = sbr.rel (%p310) target = $region60
        $region59: #{tpu_custom_call.1} parent=55 // pred_region
          %313 = dma.done [#allocation4], 1024
        $region60: #{tpu_custom_call.1} parent=55 // pred_fallthru
          _
        %s314 = smul.u32 2, %s25
        %p315 = scmp.lt.s32.totalorder %s314, 3
        %s316 = scalar_select %p315, %s314, 3
        %s317 = smul.addr %s316, 2
        %s318 = smul.addr %s317, 8
        %s319 = scalar_lea.vmem %s0, %s318
        %p320 = pneg %p46
        %p321 = pneg %p43
        %p322 = pneg %p67
        %p323 = pneg %p64
        %p324 = pneg %p88
        %p325 = pneg %p85
        %p326 = pneg %p109
        %p327 = pneg %p106
        %p328 = pneg %p130
        %p329 = pneg %p127
        %p330 = pneg %p151
        %p331 = pneg %p148
        %p332 = pneg %p172
        %p333 = pneg %p169
        %p334 = pneg %p193
        %p335 = pneg %p190
        %p336 = pneg %p214
        %p337 = pneg %p211
        %p338 = pneg %p240
        %p339 = pneg %p237
        %s340 = sand.u32 %s227, 1
        %s341 = scalar_lea.sflag [#allocation5], %s340
        %s342 = sand.u32 %s227, 1
        %s343 = smul.addr %s342, 32
        %s344 = scalar_lea.vmem [#allocation6], %s343
        %s345 = smul.u32 2, %s25
        %p346 = scmp.lt.s32.totalorder %s345, 3
        %s347 = scalar_select %p346, %s345, 3
        %s348 = smul.addr %s347, 2
        %s349 = smul.addr %s348, 8
        %s350 = scalar_lea.vmem %s0, %s349
        %s351 = smul.u32 2, %s25
        %s352 = smul.u32 2, %s25
        %v354 = vld [vmem:[%s350] sm:$0xff]
        %v355 = vld [vmem:[%s350 + $0x8] sm:$0xff]
        %v356 = vld [vmem:[%s350 + $0x10] sm:$0xff]
        %v357 = vld [vmem:[%s350 + $0x18] sm:$0xff]
        %v358 = vpack.c.bf16 %v355, %v354
        %v359 = vpack.c.bf16 %v357, %v356
        %v360 = vld [vmem:[%s1] sm:$0xf]
        %v361 = vld [vmem:[%s1 + $0x4] sm:$0xf]
        %v362 = vld [vmem:[%s1 + $0x8] sm:$0xf]
        %v363 = vld [vmem:[%s1 + $0xc] sm:$0xf]
        %v364 = vld [vmem:[%s2] sm:$0x1]
        %v366 = vlaneseq
        %v367 = vshrl.u32 %v366, 7
        %v368 = vsub.s32 0, %v367
        %v369 = vrot.slane %v364, %v368
        %v375 = vunpack.c.l.b16 %v360
        %v376 = vunpack.c.l.b16 %v361
        %v377 = vunpack.c.l.b16 %v362
        %v378 = vunpack.c.l.b16 %v363
        %v379 = vpack.c.b16 %v376, %v375
        %v380 = vpack.c.b16 %v378, %v377
        %vm383 = vcmask 261120
        %v385 = vsel %vm383, %v358, 0
        %v388 = vsel %vm383, %v359, 0
        %390 = vmatprep.subr.bf16.mxu0 0
        %391 = vmatpush1.bf16.msra.mxu0 %v379
        %392 = vmatprep.subr.bf16.mxu0 0
        %393 = vmatpush1.bf16.msra.mxu0 %v380
        %394 = vmatprep.subr.bf16.mxu0 0
        %395 = vmatpush1.bf16.msra.mxu0 0
        %396 = vmatprep.subr.bf16.mxu0 0
        %397 = vmatpush1.bf16.msra.mxu0 0
        %398 = vmatprep.subr.bf16.mxu0 0
        %399 = vmatpush1.bf16.msra.mxu0 0
        %400 = vmatprep.subr.bf16.mxu0 0
        %401 = vmatpush1.bf16.msra.mxu0 0
        %402 = vmatprep.subr.bf16.mxu0 0
        %403 = vmatpush1.bf16.msra.mxu0 0
        %404 = vmatprep.subr.bf16.mxu0 0
        %405 = vmatpush1.bf16.msra.mxu0 0
        %406 = vmatprep.subr.bf16.mxu0 0
        %407 = vmatpush1.bf16.msra.mxu0 0
        %408 = vmatprep.subr.bf16.mxu0 0
        %409 = vmatpush1.bf16.msra.mxu0 0
        %410 = vmatprep.subr.bf16.mxu0 0
        %411 = vmatpush1.bf16.msra.mxu0 0
        %412 = vmatprep.subr.bf16.mxu0 0
        %413 = vmatpush1.bf16.msra.mxu0 0
        %414 = vmatprep.subr.bf16.mxu0 0
        %415 = vmatpush1.bf16.msra.mxu0 0
        %416 = vmatprep.subr.bf16.mxu0 0
        %417 = vmatpush1.bf16.msra.mxu0 0
        %418 = vmatprep.subr.bf16.mxu0 0
        %419 = vmatpush1.bf16.msra.mxu0 0
        %420 = vmatprep.subr.bf16.mxu0 0
        %421 = vmatpush1.bf16.msra.mxu0 0
        %422 = vmatprep.mubr.bf16.mxu0 0
        %423 = vmatmul.mubr.bf16.gmra.mrb[0].mxu0 %v385
        %v424 = vpop.f32.mrb[0].mxu0
        %v425 = vadd.f32 %v369, %v424
        %v426 = vpop.f32.mrb[0].mxu0
        %v427 = vpop.f32.mrb[0].mxu0
        %v428 = vadd.f32 %v369, %v427
        %v429 = vpop.f32.mrb[0].mxu0
        %430 = vmatprep.mubr.bf16.mxu0 0
        %431 = vmatmul.mubr.bf16.gmra.mrb[0].mxu0 %v388
        %v432 = vpop.f32.mrb[0].mxu0
        %v433 = vadd.f32 %v369, %v432
        %v434 = vpop.f32.mrb[0].mxu0
        %v435 = vpop.f32.mrb[0].mxu0
        %v436 = vadd.f32 %v369, %v435
        %v437 = vpop.f32.mrb[0].mxu0
        %438 = vdwg.mxu0
        %v439 = vmax.f32 %v425, 0.0
        %v440 = vmax.f32 %v428, 0.0
        %v441 = vmax.f32 %v433, 0.0
        %v442 = vmax.f32 %v436, 0.0
        %v443 = vpack.c.bf16 %v440, %v439
        %v444 = vpack.c.bf16 %v442, %v441
        %v445 = vld [vmem:[#allocation3] sm:$0xf]
        %v446 = vld [vmem:[#allocation3 + $0x4] sm:$0xf]
        %v447 = vld [vmem:[#allocation3 + $0x8] sm:$0xf]
        %v448 = vld [vmem:[#allocation3 + $0xc] sm:$0xf]
        %v449 = vld [vmem:[#allocation3 + $0x10] sm:$0xf]
        %v450 = vld [vmem:[#allocation3 + $0x14] sm:$0xf]
        %v451 = vld [vmem:[#allocation3 + $0x18] sm:$0xf]
        %v452 = vld [vmem:[#allocation3 + $0x1c] sm:$0xf]
        %v453 = vld [vmem:[#allocation3 + $0x20] sm:$0xf]
        %v454 = vld [vmem:[#allocation3 + $0x24] sm:$0xf]
        %v455 = vld [vmem:[#allocation3 + $0x28] sm:$0xf]
        %v456 = vld [vmem:[#allocation3 + $0x2c] sm:$0xf]
        %v457 = vld [vmem:[#allocation3 + $0x30] sm:$0xf]
        %v458 = vld [vmem:[#allocation3 + $0x34] sm:$0xf]
        %v459 = vld [vmem:[#allocation3 + $0x38] sm:$0xf]
        %v460 = vld [vmem:[#allocation3 + $0x3c] sm:$0xf]
        %v461 = vld [vmem:[%s4] sm:$0x1]
        %v463 = vlaneseq
        %v464 = vshrl.u32 %v463, 7
        %v465 = vsub.s32 0, %v464
        %v466 = vrot.slane %v461, %v465
        %v484 = vunpack.c.l.b16 %v445
        %v485 = vunpack.c.l.b16 %v446
        %v486 = vunpack.c.l.b16 %v447
        %v487 = vunpack.c.l.b16 %v448
        %v488 = vunpack.c.l.b16 %v449
        %v489 = vunpack.c.l.b16 %v450
        %v490 = vunpack.c.l.b16 %v451
        %v491 = vunpack.c.l.b16 %v452
        %v492 = vunpack.c.l.b16 %v453
        %v493 = vunpack.c.l.b16 %v454
        %v494 = vunpack.c.l.b16 %v455
        %v495 = vunpack.c.l.b16 %v456
        %v496 = vunpack.c.l.b16 %v457
        %v497 = vunpack.c.l.b16 %v458
        %v498 = vunpack.c.l.b16 %v459
        %v499 = vunpack.c.l.b16 %v460
        %v500 = vpack.c.b16 %v485, %v484
        %v501 = vpack.c.b16 %v487, %v486
        %v502 = vpack.c.b16 %v489, %v488
        %v503 = vpack.c.b16 %v491, %v490
        %v504 = vpack.c.b16 %v493, %v492
        %v505 = vpack.c.b16 %v495, %v494
        %v506 = vpack.c.b16 %v497, %v496
        %v507 = vpack.c.b16 %v499, %v498
        %516 = vmatprep.subr.bf16.mxu0 0
        %517 = vmatpush1.bf16.msra.mxu0 %v500
        %518 = vmatprep.subr.bf16.mxu0 0
        %519 = vmatpush1.bf16.msra.mxu0 %v501
        %520 = vmatprep.subr.bf16.mxu0 0
        %521 = vmatpush1.bf16.msra.mxu0 %v502
        %522 = vmatprep.subr.bf16.mxu0 0
        %523 = vmatpush1.bf16.msra.mxu0 %v503
        %524 = vmatprep.subr.bf16.mxu0 0
        %525 = vmatpush1.bf16.msra.mxu0 %v504
        %526 = vmatprep.subr.bf16.mxu0 0
        %527 = vmatpush1.bf16.msra.mxu0 %v505
        %528 = vmatprep.subr.bf16.mxu0 0
        %529 = vmatpush1.bf16.msra.mxu0 %v506
        %530 = vmatprep.subr.bf16.mxu0 0
        %531 = vmatpush1.bf16.msra.mxu0 %v507
        %532 = vmatprep.subr.bf16.mxu0 0
        %533 = vmatpush1.bf16.msra.mxu0 0
        %534 = vmatprep.subr.bf16.mxu0 0
        %535 = vmatpush1.bf16.msra.mxu0 0
        %536 = vmatprep.subr.bf16.mxu0 0
        %537 = vmatpush1.bf16.msra.mxu0 0
        %538 = vmatprep.subr.bf16.mxu0 0
        %539 = vmatpush1.bf16.msra.mxu0 0
        %540 = vmatprep.subr.bf16.mxu0 0
        %541 = vmatpush1.bf16.msra.mxu0 0
        %542 = vmatprep.subr.bf16.mxu0 0
        %543 = vmatpush1.bf16.msra.mxu0 0
        %544 = vmatprep.subr.bf16.mxu0 0
        %545 = vmatpush1.bf16.msra.mxu0 0
        %546 = vmatprep.subr.bf16.mxu0 0
        %547 = vmatpush1.bf16.msra.mxu0 0
        %548 = vmatprep.mubr.bf16.mxu0 0
        %549 = vmatmul.mubr.bf16.gmra.mrb[0].mxu0 %v443
        %v550 = vpop.f32.mrb[0].mxu0
        %v551 = vadd.f32 %v466, %v550
        %v552 = vpop.f32.mrb[0].mxu0
        %v553 = vpop.f32.mrb[0].mxu0
        %v554 = vadd.f32 %v466, %v553
        %v555 = vpop.f32.mrb[0].mxu0
        %556 = vmatprep.mubr.bf16.mxu0 0
        %557 = vmatmul.mubr.bf16.gmra.mrb[0].mxu0 %v444
        %v558 = vpop.f32.mrb[0].mxu0
        %v559 = vadd.f32 %v466, %v558
        %v560 = vpop.f32.mrb[0].mxu0
        %v561 = vpop.f32.mrb[0].mxu0
        %v562 = vadd.f32 %v466, %v561
        %v563 = vpop.f32.mrb[0].mxu0
        %564 = vdwg.mxu0
        %v565 = vmax.f32 %v551, 0.0
        %v566 = vmax.f32 %v554, 0.0
        %v567 = vmax.f32 %v559, 0.0
        %v568 = vmax.f32 %v562, 0.0
        %v569 = vpack.c.bf16 %v566, %v565
        %v570 = vpack.c.bf16 %v568, %v567
        %v571 = vld [vmem:[%s5] sm:$0xf]
        %v572 = vld [vmem:[%s5 + $0x4] sm:$0xf]
        %v573 = vld [vmem:[%s5 + $0x8] sm:$0xf]
        %v574 = vld [vmem:[%s5 + $0xc] sm:$0xf]
        %v575 = vld [vmem:[%s5 + $0x10] sm:$0xf]
        %v576 = vld [vmem:[%s5 + $0x14] sm:$0xf]
        %v577 = vld [vmem:[%s5 + $0x18] sm:$0xf]
        %v578 = vld [vmem:[%s5 + $0x1c] sm:$0xf]
        %v579 = vld [vmem:[%s5 + $0x20] sm:$0xf]
        %v580 = vld [vmem:[%s5 + $0x24] sm:$0xf]
        %v581 = vld [vmem:[%s5 + $0x28] sm:$0xf]
        %v582 = vld [vmem:[%s5 + $0x2c] sm:$0xf]
        %v583 = vld [vmem:[%s5 + $0x30] sm:$0xf]
        %v584 = vld [vmem:[%s5 + $0x34] sm:$0xf]
        %v585 = vld [vmem:[%s5 + $0x38] sm:$0xf]
        %v586 = vld [vmem:[%s5 + $0x3c] sm:$0xf]
        %v587 = vld [vmem:[%s6] sm:$0x1]
        %v589 = vlaneseq
        %v590 = vshrl.u32 %v589, 7
        %v591 = vsub.s32 0, %v590
        %v592 = vrot.slane %v587, %v591
        %v610 = vunpack.c.l.b16 %v571
        %v611 = vunpack.c.l.b16 %v572
        %v612 = vunpack.c.l.b16 %v573
        %v613 = vunpack.c.l.b16 %v574
        %v614 = vunpack.c.l.b16 %v575
        %v615 = vunpack.c.l.b16 %v576
        %v616 = vunpack.c.l.b16 %v577
        %v617 = vunpack.c.l.b16 %v578
        %v618 = vunpack.c.l.b16 %v579
        %v619 = vunpack.c.l.b16 %v580
        %v620 = vunpack.c.l.b16 %v581
        %v621 = vunpack.c.l.b16 %v582
        %v622 = vunpack.c.l.b16 %v583
        %v623 = vunpack.c.l.b16 %v584
        %v624 = vunpack.c.l.b16 %v585
        %v625 = vunpack.c.l.b16 %v586
        %v626 = vpack.c.b16 %v611, %v610
        %v627 = vpack.c.b16 %v613, %v612
        %v628 = vpack.c.b16 %v615, %v614
        %v629 = vpack.c.b16 %v617, %v616
        %v630 = vpack.c.b16 %v619, %v618
        %v631 = vpack.c.b16 %v621, %v620
        %v632 = vpack.c.b16 %v623, %v622
        %v633 = vpack.c.b16 %v625, %v624
        %642 = vmatprep.subr.bf16.mxu0 0
        %643 = vmatpush1.bf16.msra.mxu0 %v626
        %644 = vmatprep.subr.bf16.mxu0 0
        %645 = vmatpush1.bf16.msra.mxu0 %v627
        %646 = vmatprep.subr.bf16.mxu0 0
        %647 = vmatpush1.bf16.msra.mxu0 %v628
        %648 = vmatprep.subr.bf16.mxu0 0
        %649 = vmatpush1.bf16.msra.mxu0 %v629
        %650 = vmatprep.subr.bf16.mxu0 0
        %651 = vmatpush1.bf16.msra.mxu0 %v630
        %652 = vmatprep.subr.bf16.mxu0 0
        %653 = vmatpush1.bf16.msra.mxu0 %v631
        %654 = vmatprep.subr.bf16.mxu0 0
        %655 = vmatpush1.bf16.msra.mxu0 %v632
        %656 = vmatprep.subr.bf16.mxu0 0
        %657 = vmatpush1.bf16.msra.mxu0 %v633
        %658 = vmatprep.subr.bf16.mxu0 0
        %659 = vmatpush1.bf16.msra.mxu0 0
        %660 = vmatprep.subr.bf16.mxu0 0
        %661 = vmatpush1.bf16.msra.mxu0 0
        %662 = vmatprep.subr.bf16.mxu0 0
        %663 = vmatpush1.bf16.msra.mxu0 0
        %664 = vmatprep.subr.bf16.mxu0 0
        %665 = vmatpush1.bf16.msra.mxu0 0
        %666 = vmatprep.subr.bf16.mxu0 0
        %667 = vmatpush1.bf16.msra.mxu0 0
        %668 = vmatprep.subr.bf16.mxu0 0
        %669 = vmatpush1.bf16.msra.mxu0 0
        %670 = vmatprep.subr.bf16.mxu0 0
        %671 = vmatpush1.bf16.msra.mxu0 0
        %672 = vmatprep.subr.bf16.mxu0 0
        %673 = vmatpush1.bf16.msra.mxu0 0
        %674 = vmatprep.mubr.bf16.mxu0 0
        %675 = vmatmul.mubr.bf16.gmra.mrb[0].mxu0 %v569
        %v676 = vpop.f32.mrb[0].mxu0
        %v677 = vadd.f32 %v592, %v676
        %v678 = vpop.f32.mrb[0].mxu0
        %v679 = vpop.f32.mrb[0].mxu0
        %v680 = vadd.f32 %v592, %v679
        %v681 = vpop.f32.mrb[0].mxu0
        %682 = vmatprep.mubr.bf16.mxu0 0
        %683 = vmatmul.mubr.bf16.gmra.mrb[0].mxu0 %v570
        %v684 = vpop.f32.mrb[0].mxu0
        %v685 = vadd.f32 %v592, %v684
        %v686 = vpop.f32.mrb[0].mxu0
        %v687 = vpop.f32.mrb[0].mxu0
        %v688 = vadd.f32 %v592, %v687
        %v689 = vpop.f32.mrb[0].mxu0
        %690 = vdwg.mxu0
        %v691 = vadd.f32 %v354, %v677
        %v692 = vadd.f32 %v355, %v680
        %v693 = vadd.f32 %v356, %v685
        %v694 = vadd.f32 %v357, %v688
        %v695 = vsel %vm383, %v691, 0.0
        %v696 = vsel %vm383, %v692, 0.0
        %v697 = vadd.f32 %v695, %v696
        %v698 = vrot.slane %v697, 4
        %v699 = vadd.f32 %v697, %v698
        %v700 = vrot.slane %v699, 2
        %v701 = vadd.f32 %v699, %v700
        %v702 = vrot.slane %v701, 1
        %v703 = vadd.f32 %v701, %v702
        %v704 = vsel %vm383, %v693, 0.0
        %v705 = vsel %vm383, %v694, 0.0
        %v706 = vadd.f32 %v704, %v705
        %v707 = vrot.slane %v706, 4
        %v708 = vadd.f32 %v706, %v707
        %v709 = vrot.slane %v708, 2
        %v710 = vadd.f32 %v708, %v709
        %v711 = vrot.slane %v710, 1
        %v712 = vadd.f32 %v710, %v711
        %v713 = vrcp.pop 16.0
        %v714 = vmul.f32 %v703, %v713
        %v715 = vmul.f32 %v712, %v713
        %v716 = vld [vmem:[%s7] sm:$0x1]
        %v717 = vmul.f32 %v714, %v716
        %v718 = vmul.f32 %v715, %v716
        %v719 = vlaneseq
        %v720 = vshrl.u32 %v719, 7
        %v721 = vsub.s32 0, %v720
        %v722 = vrot.slane %v717, %v721
        %v723 = vlaneseq
        %v724 = vshrl.u32 %v723, 7
        %v725 = vsub.s32 0, %v724
        %v726 = vrot.slane %v718, %v725
        %v727 = vsub.f32 %v691, %v722
        %v728 = vsub.f32 %v692, %v722
        %v729 = vsub.f32 %v693, %v726
        %v730 = vsub.f32 %v694, %v726
        %s731 = sld [smem:[#allocation2]]
        %v732 = vstv %s731
        %v733 = vmul.f32 %v727, %v732
        %v734 = vmul.f32 %v728, %v732
        %v735 = vmul.f32 %v729, %v732
        %v736 = vmul.f32 %v730, %v732
        %737 = vst.msk [vmem:[%s344] sm:$0xff] %vm383, %v733
        %738 = vst.msk [vmem:[%s344 + $0x8] sm:$0xff] %vm383, %v734
        %739 = vst.msk [vmem:[%s344 + $0x10] sm:$0xff] %vm383, %v735
        %740 = vst.msk [vmem:[%s344 + $0x18] sm:$0xff] %vm383, %v736
        %s741 = sand.u32 %s227, 1
        %s742 = scalar_lea.sflag [#allocation5], %s741
        %s743 = sand.u32 %s227, 1
        %s744 = smul.addr %s743, 32
        %s745 = scalar_lea.vmem [#allocation6], %s744
        // Predicated region
        $region61: #{tpu_custom_call.1} parent=55 // pred_check
          %p746 = pneg %p237
        $region62: #{tpu_custom_call.1} parent=55 // pred_check_branch
          %748 = sbr.rel (%p746) target = $region64
        $region63: #{tpu_custom_call.1} parent=55 // pred_region
          %s749 = smul.u32 2, %s25
          %s751 = ssub.s32 512, 512
          %752 = vsyncadd %s742, %s751
          %s753 = smul.addr %s749, 2
          %s754 = smul.addr %s753, 128
          %s755 = scalar_lea.hbm %s9, %s754
          %s756 = sshll.u32 %s745, 4
          %s757 = int_to_ptr.vmem [resolvable:$true] %s756
          %762 = dma.vmem_to_hbm [thread:$0]  %s757, 512, %s755, %s742, 128, 128, 8
        $region64: #{tpu_custom_call.1} parent=55 // pred_fallthru
          _
      $region56: #{tpu_custom_call.1} parent=5 // pred_fallthru
        _
      %p763 = scmp.le.s32.totalorder 2, %s20
      // Predicated region
      $region65: #{tpu_custom_call.1} parent=5 // pred_check
        %p764 = pneg %p763
      $region66: #{tpu_custom_call.1} parent=5 // pred_check_branch
        %766 = sbr.rel (%p764) target = $region68
      $region67: #{tpu_custom_call.1} parent=5 // pred_region
        %s767 = ssub.s32 %s20, 2
        // Predicated region
        $region69: #{tpu_custom_call.1} parent=67 // pred_check
          %p768 = pneg %p243
        $region70: #{tpu_custom_call.1} parent=67 // pred_check_branch
          %770 = sbr.rel (%p768) target = $region72
        $region71: #{tpu_custom_call.1} parent=67 // pred_region
          %s771 = sand.u32 %s228, 1
          %s772 = scalar_lea.sflag [#allocation5], %s771
          %s773 = sand.u32 %s228, 1
          %s774 = smul.addr %s773, 32
          %s775 = scalar_lea.vmem [#allocation6], %s774
          %776 = dma.done %s772, 512
        $region72: #{tpu_custom_call.1} parent=67 // pred_fallthru
          _
      $region68: #{tpu_custom_call.1} parent=5 // pred_fallthru
        _
    $region6: #{tpu_custom_call.1} parent=1 // loop_footer
      %s24 = sadd.s32 1, %s20
    $region7: #{tpu_custom_call.1} parent=1 // loop_footer_branch
      %19 = sbr.rel target = $region3
    $region8: #{tpu_custom_call.1} parent=1 // loop_exit
      _
    %777 = vsyncpa [#allocation4], 1
    %s778 = scalar_lea.sflag [#allocation4], 1
    %779 = vsyncpa %s778, 1
    %780 = vsyncpa [#allocation5], 1
    %s781 = scalar_lea.sflag [#allocation5], 1
    %782 = vsyncpa %s781, 1

</llo_original>
